<compile_context>
chip_gen: v6e
topology: v6e:2x2x1
jax: 0.10.0
libtpu: 0.0.40
codegen_flags: <defaults>
</compile_context>

<pallas_src>
import functools

import jax
import jax.numpy as jnp
import numpy as np
from jax import lax
from jax.experimental import pallas as pl
from jax.experimental.pallas import tpu as pltpu


_TARGET_TILE_BYTES = 2 * 1024 * 1024   # ~2 MiB per input per grid step
_VMEM_LIMIT_BYTES = 32 * 1024 * 1024   # > v5e's 16 MiB scoped default, < v7x's 64 MiB physical


def _round_up(x, m):
    return ((x + m - 1) // m) * m


def _mse_sum_kernel(pred_ref, tgt_ref, out_ref, acc_ref, *,
                    rows_valid, rows_tile, need_row_mask):
    """Accumulates per-sample sum((pred - tgt)^2) over feature-row tiles.

    pred_ref / tgt_ref : (Bt, rows_tile, lanes) VMEM tiles
    out_ref            : (Bt, 1, 1) per-sample squared-diff sums (f32)
    acc_ref            : (Bt, 1, 1) f32 VMEM scratch (running sum over k)
    """
    k = pl.program_id(1)

    @pl.when(k == 0)
    def _init():
        acc_ref[...] = jnp.zeros_like(acc_ref)

    diff = pred_ref[...].astype(jnp.float32) - tgt_ref[...].astype(jnp.float32)
    sq = diff * diff                                            # VPU elementwise
    if need_row_mask:
        # Ragged last feature tile: zero rows past the real row count instead of
        # padding the inputs in HBM (garbage/NaN in the overrun region is safely
        # dropped by the select).
        row_ids = k * rows_tile + lax.broadcasted_iota(jnp.int32, sq.shape, 1)
        sq = jnp.where(row_ids < rows_valid, sq, 0.0)
    lane_sum = jnp.sum(sq, axis=2, keepdims=True)               # (Bt, rows_tile, 1)
    acc_ref[...] += jnp.sum(lane_sum, axis=1, keepdims=True)    # (Bt, 1, 1)

    @pl.when(k == pl.num_programs(1) - 1)
    def _finalize():
        out_ref[...] = acc_ref[...]


def min_snr_v_loss(v_pred, v_target, timesteps, snr, gamma=5.0):
    """Forward of MinSNRVLoss: mean_b( mean_chw((v_pred-v_target)^2) * min(snr,g)/snr )."""
    del timesteps  # unused by the reference forward (caller supplies SNR directly)

    B = v_pred.shape[0]
    F = int(np.prod(v_pred.shape[1:]))
    itemsize = np.dtype(v_pred.dtype).itemsize   # bf16 passes through un-upcast

    # ---- choose a lane width dividing F so the slab reshape is a free bitcast ----
    if F % 128 == 0:
        lanes = 128
        for cand in (512, 256):
            if F % cand == 0 and F // cand >= 8:   # keep >= 8 rows (full sublanes)
                lanes = cand
                break
        f_pad = F
    else:
        # Rare fallback: F not a multiple of 128 -> tiny zero-pad; zeros add 0 to
        # the squared-diff sum and the mean still divides by the true F.
        lanes = 128
        f_pad = _round_up(F, 128)
    rows = f_pad // lanes

    # Physical VMEM footprint per sample (sublane axis pads to a multiple of 8).
    phys_per_sample = _round_up(rows, 8) * lanes * itemsize

    if phys_per_sample >= _TARGET_TILE_BYTES:
        # --- Case A: large F -> one sample per step, tile the feature rows. ---
        bt = 1
        rows_tile = max(8, (_TARGET_TILE_BYTES // (lanes * itemsize)) // 8 * 8)
        if rows_tile >= rows:
            rows_tile = rows
        n_k = -(-rows // rows_tile)
        need_row_mask = (rows % rows_tile) != 0
    else:
        # --- Case B: small F -> whole sample per step; block the batch axis so
        # each DMA still moves ~MiB-class data instead of tens of KiB. ---
        rows_tile = rows
        n_k = 1
        need_row_mask = False
        bt = max(1, _TARGET_TILE_BYTES // phys_per_sample)
        if B >= 2:
            # Keep >= 2 steps on the parallel batch axis so both v7x TensorCores
            # get work (no effect on single-TC v5e/v6e).
            bt = min(bt, -(-B // 2))
        bt = min(bt, B)
    n_b = -(-B // bt)

    def prep(x):
        x2 = x.reshape(B, F)
        if f_pad != F:
            x2 = jnp.pad(x2, ((0, 0), (0, f_pad - F)))
        return x2.reshape(B, rows, lanes)

    pred3 = prep(v_pred)
    tgt3 = prep(v_target)

    kernel = functools.partial(
        _mse_sum_kernel,
        rows_valid=rows, rows_tile=rows_tile, need_row_mask=need_row_mask)

    per_sample_sq_sum = pl.pallas_call(
        kernel,
        out_shape=jax.ShapeDtypeStruct((B, 1, 1), jnp.float32),
        grid_spec=pltpu.PrefetchScalarGridSpec(
            num_scalar_prefetch=0,
            grid=(n_b, n_k),
            in_specs=[
                pl.BlockSpec((bt, rows_tile, lanes), lambda b, k: (b, k, 0)),  # pred
                pl.BlockSpec((bt, rows_tile, lanes), lambda b, k: (b, k, 0)),  # target
            ],
            out_specs=pl.BlockSpec((bt, 1, 1), lambda b, k: (b, 0, 0)),
            scratch_shapes=[pltpu.VMEM((bt, 1, 1), jnp.float32)],
        ),
        compiler_params=pltpu.CompilerParams(
            dimension_semantics=("parallel", "arbitrary"),
            vmem_limit_bytes=_VMEM_LIMIT_BYTES,
        ),
        cost_estimate=pl.CostEstimate(
            flops=3 * B * F,
            transcendentals=0,
            bytes_accessed=2 * B * F * itemsize + B * 4,
        ),
    )(pred3, tgt3)

    # O(B) epilogue (fused by XLA): per-sample MSE, Min-SNR weight, batch mean.
    sq_sum = per_sample_sq_sum[:, 0, 0].astype(jnp.float32)
    snr_f = snr.astype(jnp.float32)
    weights = jnp.minimum(snr_f, jnp.float32(gamma)) / snr_f
    return jnp.mean((sq_sum * jnp.float32(1.0 / F)) * weights)


def _reference(v_pred, v_target, snr, gamma=5.0):
    loss = jnp.mean(
        (v_pred.astype(jnp.float32) - v_target.astype(jnp.float32)) ** 2,
        axis=tuple(range(1, v_pred.ndim)))
    w = jnp.minimum(snr, gamma) / snr
    return jnp.mean(loss * w)


if __name__ == "__main__":
    key = jax.random.PRNGKey(0)
    k1, k2, k3 = jax.random.split(key, 3)

    B, C, H, W = 2, 4, 16, 16
    v_pred = jax.random.normal(k1, (B, C, H, W), dtype=jnp.float32)
    v_target = jax.random.normal(k2, (B, C, H, W), dtype=jnp.float32)
    timesteps = jnp.arange(B, dtype=jnp.int32) * 100
    # positive SNR values
    snr = jnp.exp(jax.random.normal(k3, (B,), dtype=jnp.float32)) * 3.0

    out = min_snr_v_loss(v_pred, v_target, timesteps, snr, gamma=5.0)
    out = jax.block_until_ready(out)

    ref = _reference(v_pred, v_target, snr, gamma=5.0)
    np.testing.assert_allclose(np.asarray(out), np.asarray(ref), rtol=1e-5, atol=1e-6)

    print("KERNEL_OK")
</pallas_src>

<mosaic_0001>
module attributes {stable_mosaic.version = 11 : i64} {
  func.func @_mse_sum_kernel(%arg0: i32, %arg1: i32, %arg2: memref<1x8x128xf32, #tpu.memory_space<vmem>>, %arg3: memref<1x8x128xf32, #tpu.memory_space<vmem>>, %arg4: memref<1x1x1xf32, #tpu.memory_space<vmem>>, %arg5: memref<1x1x1xf32, #tpu.memory_space<vmem>>) attributes {dimension_semantics = [#tpu.dimension_semantics<parallel>, #tpu.dimension_semantics<arbitrary>], iteration_bounds = array<i64: 2, 1>, scalar_prefetch = 0 : i64, scratch_operands = 1 : i64, tpu.core_type = #tpu.core_type<tc>, window_params = [{transform_indices = @transform_0, window_bounds = array<i64: 1, 8, 128>}, {transform_indices = @transform_1, window_bounds = array<i64: 1, 8, 128>}, {transform_indices = @transform_2, window_bounds = array<i64: 1, 1, 1>}]} {
    %c0_i32 = arith.constant 0 : i32
    %0 = arith.cmpi eq, %arg1, %c0_i32 : i32
    %1 = arith.extui %0 : i1 to i32
    %c0_i32_0 = arith.constant 0 : i32
    %2 = arith.cmpi ne, %1, %c0_i32_0 : i32
    scf.if %2 {
      %cst_15 = arith.constant 0.000000e+00 : f32
      %17 = vector.broadcast %cst_15 : f32 to vector<1x1x1xf32>
      %c0_16 = arith.constant 0 : index
      %c0_17 = arith.constant 0 : index
      %c0_18 = arith.constant 0 : index
      %18 = vector.load %arg5[%c0_16, %c0_17, %c0_18] : memref<1x1x1xf32, #tpu.memory_space<vmem>>, vector<1x1x1xf32>
      tpu.vector_store %arg5[%c0_16, %c0_17, %c0_18], %17 {strides = array<i32>} : memref<1x1x1xf32, #tpu.memory_space<vmem>>, vector<1x1x1xf32>,
    } else {
    }
    %c0 = arith.constant 0 : index
    %c0_1 = arith.constant 0 : index
    %c0_2 = arith.constant 0 : index
    %3 = vector.load %arg2[%c0, %c0_1, %c0_2] : memref<1x8x128xf32, #tpu.memory_space<vmem>>, vector<1x8x128xf32>
    %c0_3 = arith.constant 0 : index
    %c0_4 = arith.constant 0 : index
    %c0_5 = arith.constant 0 : index
    %4 = vector.load %arg3[%c0_3, %c0_4, %c0_5] : memref<1x8x128xf32, #tpu.memory_space<vmem>>, vector<1x8x128xf32>
    %5 = arith.subf %3, %4 : vector<1x8x128xf32>
    %6 = arith.mulf %5, %5 : vector<1x8x128xf32>
    %cst = arith.constant dense<0.000000e+00> : vector<1x8xf32>
    %7 = vector.multi_reduction <add>, %6, %cst [2] : vector<1x8x128xf32> to vector<1x8xf32>
    %8 = vector.shape_cast %7 : vector<1x8xf32> to vector<1x8x1xf32>
    %c0_6 = arith.constant 0 : index
    %c0_7 = arith.constant 0 : index
    %c0_8 = arith.constant 0 : index
    %9 = vector.load %arg5[%c0_6, %c0_7, %c0_8] : memref<1x1x1xf32, #tpu.memory_space<vmem>>, vector<1x1x1xf32>
    %cst_9 = arith.constant dense<0.000000e+00> : vector<1x1xf32>
    %10 = vector.multi_reduction <add>, %8, %cst_9 [1] : vector<1x8x1xf32> to vector<1x1xf32>
    %11 = vector.shape_cast %10 : vector<1x1xf32> to vector<1x1x1xf32>
    %12 = arith.addf %9, %11 : vector<1x1x1xf32>
    %c0_10 = arith.constant 0 : index
    %c0_11 = arith.constant 0 : index
    %c0_12 = arith.constant 0 : index
    %13 = vector.load %arg5[%c0_10, %c0_11, %c0_12] : memref<1x1x1xf32, #tpu.memory_space<vmem>>, vector<1x1x1xf32>
    tpu.vector_store %arg5[%c0_10, %c0_11, %c0_12], %12 {strides = array<i32>} : memref<1x1x1xf32, #tpu.memory_space<vmem>>, vector<1x1x1xf32>,
    %c0_i32_13 = arith.constant 0 : i32
    %14 = arith.cmpi eq, %arg1, %c0_i32_13 : i32
    %15 = arith.extui %14 : i1 to i32
    %c0_i32_14 = arith.constant 0 : i32
    %16 = arith.cmpi ne, %15, %c0_i32_14 : i32
    scf.if %16 {
      %c0_15 = arith.constant 0 : index
      %c0_16 = arith.constant 0 : index
      %c0_17 = arith.constant 0 : index
      %17 = vector.load %arg5[%c0_15, %c0_16, %c0_17] : memref<1x1x1xf32, #tpu.memory_space<vmem>>, vector<1x1x1xf32>
      %c0_18 = arith.constant 0 : index
      %c0_19 = arith.constant 0 : index
      %c0_20 = arith.constant 0 : index
      %18 = vector.load %arg4[%c0_18, %c0_19, %c0_20] : memref<1x1x1xf32, #tpu.memory_space<vmem>>, vector<1x1x1xf32>
      tpu.vector_store %arg4[%c0_18, %c0_19, %c0_20], %17 {strides = array<i32>} : memref<1x1x1xf32, #tpu.memory_space<vmem>>, vector<1x1x1xf32>,
    } else {
    }
    return
  }
  func.func @transform_0(%arg0: i32, %arg1: i32) -> (i32, i32, i32) {
    %c0_i32 = arith.constant 0 : i32
    %c0_i32_0 = arith.constant 0 : i32
    return %arg0, %arg1, %c0_i32 : i32, i32, i32
  }
  func.func @transform_1(%arg0: i32, %arg1: i32) -> (i32, i32, i32) {
    %c0_i32 = arith.constant 0 : i32
    %c0_i32_0 = arith.constant 0 : i32
    return %arg0, %arg1, %c0_i32 : i32, i32, i32
  }
  func.func @transform_2(%arg0: i32, %arg1: i32) -> (i32, i32, i32) {
    %c0_i32 = arith.constant 0 : i32
    %c0_i32_0 = arith.constant 0 : i32
    %c0_i32_1 = arith.constant 0 : i32
    return %arg0, %c0_i32, %c0_i32_0 : i32, i32, i32
  }
}

</mosaic_0001>

<llo_original>
// kernel: tpu_custom_call.1
$region0: #{tpu_custom_call.1}
  #allocation0 [shape = 'u32[]', space=smem, size = 0x4, offset = 0x4, fixed_abs, tag = 'smem constant byte address 0x4 - core index']
  #allocation1 [shape = 'u32[144,128]{1,0:T(1,128)}', space=vmem, size = 0x12000, scoped, tag = 'internal scratch']
  #allocation2 [shape = 'f32[1,1,1]{2,1,0:T(1,128)}', space=vmem, size = 0x200, scoped, tag = 'scratch operand']
  %s0 = inlined_call_operand.hbm [shape: f32[2,8,128], index: 0, kind: input, shape index: {}]
  %s1 = inlined_call_operand.hbm [shape: f32[2,8,128], index: 1, kind: input, shape index: {}]
  %s2 = inlined_call_operand.vmem [shape: f32[2,1,1], index: 2, kind: output, shape index: {}]
  %s3 = sld [smem:[#allocation0]]
  $region57: #{tpu_custom_call.1} parent=0
    _
  %s5 = ssub.s32 1, %s3
  %s6 = scalar_select 0, %s5, %s3
  $region1: #{tpu_custom_call.1} parent=0
    #allocation3 [shape = 'u8[8192]{0}', space=vmem, size = 0x2000, scoped, tag = 'input window, operand 0']
    #allocation4 [shape = 's32[2]{0}', space=sflag, size = 0x8, scoped, tag = 'scoped memory for tpu_custom_call.1']
    #allocation5 [shape = 'u8[8192]{0}', space=vmem, size = 0x2000, scoped, tag = 'input window, operand 1']
    #allocation6 [shape = 's32[2]{0}', space=sflag, size = 0x8, scoped, tag = 'scoped memory for tpu_custom_call.1']
    %7 = vsyncpa [#allocation4], 0
    %s8 = scalar_lea.sflag [#allocation4], 1
    %9 = vsyncpa %s8, 0
    %10 = vsyncpa [#allocation6], 0
    %s11 = scalar_lea.sflag [#allocation6], 1
    %12 = vsyncpa %s11, 0
    loop: start=0, step=1, limit=4
    $region2: #{tpu_custom_call.1} parent=1 // loop_pre_header
      _
    $region3: #{tpu_custom_call.1} parent=1 // loop_header
      %s14 = sphi 0, %s18
      %p15 = scmp.ge.s32.totalorder %s14, 4
      %s21 = sphi 0, %s33
      %s22 = sphi 0, %s29
      %s23 = sphi 0, %s21
      %s24 = sphi 0, %s22
      %s25 = sphi 0, %s23
      %s26 = sphi 0, %s24
      %s38 = sphi 0, %s40
      %s41 = sphi 0, %s38
      %s42 = sphi 0, %s41
      %s58 = sphi 0, %s42
      %s66 = sphi 0, %s68
      %s69 = sphi 0, %s66
      %s70 = sphi 0, %s69
      %s86 = sphi 0, %s70
      %s92 = sphi 0, %s94
      %s95 = sphi 0, %s92
      %s96 = sphi 0, %s95
      %s112 = sphi 0, %s96
    $region4: #{tpu_custom_call.1} parent=1 // loop_header_branch
      %17 = sbr.rel (%p15) target = $region8
    $region5: #{tpu_custom_call.1} parent=1 // loop_body
      %s19 = ssub.s32 %s14, 1
      %s20 = ssub.s32 %s14, 2
      %s27 = sadd.s32 1, %s22
      %p28 = scmp.ge.s32.totalorder %s27, 1
      %s29 = scalar_select %p28, 0, %s27
      %s30 = sadd.s32 1, %s21
      %s31 = scalar_select %p28, %s30, %s21
      %p32 = scmp.ge.s32.totalorder %s31, 2
      %s33 = scalar_select %p32, 0, %s31
      %s34 = ssub.s32 %s21, %s33
      %s35 = ssub.s32 %s22, %s29
      %s36 = sor.u32 %s34, %s35
      %p37 = scmp.eq.s32.totalorder %s36, 0
      %s39 = sadd.s32 %s38, 1
      %s40 = scalar_select %p37, %s38, %s39
      %p43 = pneg %p37
      %p44 = scmp.eq.s32.totalorder %s14, 1
      %p45 = por %p43, %p44
      %p46 = scmp.ne.s32.totalorder %s38, %s41
      %p47 = scmp.eq.s32.totalorder %s14, 0
      %p48 = por %p46, %p47
      %p49 = scmp.ne.s32.totalorder %s38, %s41
      %p50 = scmp.eq.s32.totalorder %s19, 1
      %p51 = por %p49, %p50
      %p52 = scmp.ne.s32.totalorder %s41, %s42
      %p53 = scmp.eq.s32.totalorder %s19, 0
      %p54 = por %p52, %p53
      %p55 = scmp.ne.s32.totalorder %s41, %s42
      %p56 = scmp.eq.s32.totalorder %s20, 1
      %p57 = por %p55, %p56
      %p59 = scmp.ne.s32.totalorder %s42, %s58
      %p60 = scmp.eq.s32.totalorder %s20, 0
      %p61 = por %p59, %p60
      %s62 = ssub.s32 %s21, %s33
      %s63 = ssub.s32 %s22, %s29
      %s64 = sor.u32 %s62, %s63
      %p65 = scmp.eq.s32.totalorder %s64, 0
      %s67 = sadd.s32 %s66, 1
      %s68 = scalar_select %p65, %s66, %s67
      %p71 = pneg %p65
      %p72 = scmp.eq.s32.totalorder %s14, 1
      %p73 = por %p71, %p72
      %p74 = scmp.ne.s32.totalorder %s66, %s69
      %p75 = scmp.eq.s32.totalorder %s14, 0
      %p76 = por %p74, %p75
      %p77 = scmp.ne.s32.totalorder %s66, %s69
      %p78 = scmp.eq.s32.totalorder %s19, 1
      %p79 = por %p77, %p78
      %p80 = scmp.ne.s32.totalorder %s69, %s70
      %p81 = scmp.eq.s32.totalorder %s19, 0
      %p82 = por %p80, %p81
      %p83 = scmp.ne.s32.totalorder %s69, %s70
      %p84 = scmp.eq.s32.totalorder %s20, 1
      %p85 = por %p83, %p84
      %p87 = scmp.ne.s32.totalorder %s70, %s86
      %p88 = scmp.eq.s32.totalorder %s20, 0
      %p89 = por %p87, %p88
      %s90 = ssub.s32 %s21, %s33
      %p91 = scmp.eq.s32.totalorder %s90, 0
      %s93 = sadd.s32 %s92, 1
      %s94 = scalar_select %p91, %s92, %s93
      %p97 = pneg %p91
      %p98 = scmp.eq.s32.totalorder %s14, 1
      %p99 = por %p97, %p98
      %p100 = scmp.ne.s32.totalorder %s92, %s95
      %p101 = scmp.eq.s32.totalorder %s14, 0
      %p102 = por %p100, %p101
      %p103 = scmp.ne.s32.totalorder %s92, %s95
      %p104 = scmp.eq.s32.totalorder %s19, 1
      %p105 = por %p103, %p104
      %p106 = scmp.ne.s32.totalorder %s95, %s96
      %p107 = scmp.eq.s32.totalorder %s19, 0
      %p108 = por %p106, %p107
      %p109 = scmp.ne.s32.totalorder %s95, %s96
      %p110 = scmp.eq.s32.totalorder %s20, 1
      %p111 = por %p109, %p110
      %p113 = scmp.ne.s32.totalorder %s96, %s112
      %p114 = scmp.eq.s32.totalorder %s20, 0
      %p115 = por %p113, %p114
      %p116 = scmp.le.s32.totalorder 1, %s14
      %p117 = scmp.lt.s32.totalorder %s14, 3
      %p118 = pnand %p116, %p117
      %p119 = pneg %p118
      // Predicated region
      $region9: #{tpu_custom_call.1} parent=5 // pred_check
        _
      $region10: #{tpu_custom_call.1} parent=5 // pred_check_branch
        %121 = sbr.rel (%p118) target = $region12
      $region11: #{tpu_custom_call.1} parent=5 // pred_region
        %s122 = ssub.s32 %s14, 1
      $region12: #{tpu_custom_call.1} parent=5 // pred_fallthru
        _
      %p123 = scmp.lt.s32.totalorder %s14, 2
      // Predicated region
      $region13: #{tpu_custom_call.1} parent=5 // pred_check
        %p124 = pneg %p123
      $region14: #{tpu_custom_call.1} parent=5 // pred_check_branch
        %126 = sbr.rel (%p124) target = $region16
      $region15: #{tpu_custom_call.1} parent=5 // pred_region
        // Predicated region
        $region17: #{tpu_custom_call.1} parent=15 // pred_check
          %p127 = pneg %p48
        $region18: #{tpu_custom_call.1} parent=15 // pred_check_branch
          %129 = sbr.rel (%p127) target = $region20
        $region19: #{tpu_custom_call.1} parent=15 // pred_region
          %s130 = sand.u32 %s38, 1
          %s131 = scalar_lea.sflag [#allocation4], %s130
          %s132 = sand.u32 %s38, 1
          %s133 = smul.addr %s132, 8
          %s134 = scalar_lea.vmem [#allocation3], %s133
          %s136 = ssub.s32 128, 128
          %137 = vsyncadd %s131, %s136
          %s138 = sadd.s32 %s22, %s21
          %s139 = smul.addr %s138, 128
          %s140 = scalar_lea.hbm %s0, %s139
          %s142 = sshll.u32 %s134, 4
          %s143 = int_to_ptr.vmem [resolvable:$true] %s142
          %145 = dma.hbm_to_vmem [thread:$0]  %s140, 128, %s143, %s131
        $region20: #{tpu_custom_call.1} parent=15 // pred_fallthru
          _
        // Predicated region
        $region21: #{tpu_custom_call.1} parent=15 // pred_check
          %p146 = pneg %p76
        $region22: #{tpu_custom_call.1} parent=15 // pred_check_branch
          %148 = sbr.rel (%p146) target = $region24
        $region23: #{tpu_custom_call.1} parent=15 // pred_region
          %s149 = sand.u32 %s66, 1
          %s150 = scalar_lea.sflag [#allocation6], %s149
          %s151 = sand.u32 %s66, 1
          %s152 = smul.addr %s151, 8
          %s153 = scalar_lea.vmem [#allocation5], %s152
          %s155 = ssub.s32 128, 128
          %156 = vsyncadd %s150, %s155
          %s157 = sadd.s32 %s22, %s21
          %s158 = smul.addr %s157, 128
          %s159 = scalar_lea.hbm %s1, %s158
          %s161 = sshll.u32 %s153, 4
          %s162 = int_to_ptr.vmem [resolvable:$true] %s161
          %164 = dma.hbm_to_vmem [thread:$0]  %s159, 128, %s162, %s150
        $region24: #{tpu_custom_call.1} parent=15 // pred_fallthru
          _
      $region16: #{tpu_custom_call.1} parent=5 // pred_fallthru
        _
      %p165 = scmp.le.s32.totalorder 1, %s14
      %p166 = scmp.lt.s32.totalorder %s14, 3
      %p167 = pnand %p165, %p166
      %p168 = pneg %p167
      // Predicated region
      $region25: #{tpu_custom_call.1} parent=5 // pred_check
        _
      $region26: #{tpu_custom_call.1} parent=5 // pred_check_branch
        %170 = sbr.rel (%p167) target = $region28
      $region27: #{tpu_custom_call.1} parent=5 // pred_region
        %s171 = ssub.s32 %s14, 1
        %s172 = sand.u32 %s41, 1
        %s173 = scalar_lea.sflag [#allocation4], %s172
        %s174 = sand.u32 %s41, 1
        %s175 = smul.addr %s174, 8
        %s176 = scalar_lea.vmem [#allocation3], %s175
        // Predicated region
        $region29: #{tpu_custom_call.1} parent=27 // pred_check
          %p177 = pneg %p54
        $region30: #{tpu_custom_call.1} parent=27 // pred_check_branch
          %179 = sbr.rel (%p177) target = $region32
        $region31: #{tpu_custom_call.1} parent=27 // pred_region
          %180 = dma.done %s173, 128
        $region32: #{tpu_custom_call.1} parent=27 // pred_fallthru
          _
        %s181 = sand.u32 %s69, 1
        %s182 = scalar_lea.sflag [#allocation6], %s181
        %s183 = sand.u32 %s69, 1
        %s184 = smul.addr %s183, 8
        %s185 = scalar_lea.vmem [#allocation5], %s184
        // Predicated region
        $region33: #{tpu_custom_call.1} parent=27 // pred_check
          %p186 = pneg %p82
        $region34: #{tpu_custom_call.1} parent=27 // pred_check_branch
          %188 = sbr.rel (%p186) target = $region36
        $region35: #{tpu_custom_call.1} parent=27 // pred_region
          %189 = dma.done %s182, 128
        $region36: #{tpu_custom_call.1} parent=27 // pred_fallthru
          _
        %s190 = sand.u32 %s41, 1
        %s191 = scalar_lea.sflag [#allocation4], %s190
        %s192 = sand.u32 %s41, 1
        %s193 = smul.addr %s192, 8
        %s194 = scalar_lea.vmem [#allocation3], %s193
        %p195 = pneg %p54
        %p196 = pneg %p51
        %s197 = sand.u32 %s69, 1
        %s198 = scalar_lea.sflag [#allocation6], %s197
        %s199 = sand.u32 %s69, 1
        %s200 = smul.addr %s199, 8
        %s201 = scalar_lea.vmem [#allocation5], %s200
        %p202 = pneg %p82
        %p203 = pneg %p79
        %p204 = pneg %p108
        %p205 = pneg %p105
        %p206 = scmp.lt.s32.totalorder %s23, 1
        %s207 = scalar_select %p206, %s23, 1
        %s208 = scalar_lea.vmem %s2, %s207
        %p209 = scmp.lt.s32.totalorder %s23, 1
        %s210 = scalar_select %p209, %s23, 1
        %s211 = scalar_lea.vmem %s2, %s210
        %p212 = scmp.eq.s32.totalorder %s24, 0
        // Predicated region
        $region37: #{tpu_custom_call.1} parent=27 // pred_check
          %p213 = pneg %p212
        $region38: #{tpu_custom_call.1} parent=27 // pred_check_branch
          %215 = sbr.rel (%p213) target = $region40
        $region39: #{tpu_custom_call.1} parent=27 // pred_region
          %vm216 = vcmask 0
          %217 = vst.msk [vmem:[#allocation2] sm:$0x1] %vm216, 0.0
        $region40: #{tpu_custom_call.1} parent=27 // pred_fallthru
          _
        %v218 = vld [vmem:[%s176] sm:$0xff]
        %v219 = vld [vmem:[%s185] sm:$0xff]
        %v220 = vsub.f32 %v218, %v219
        %v221 = vmul.f32 %v220, %v220
        %222 = vadd.xlane.f32.xlu0 %v221
        %v223 = vpop.xlane.xlu0 %222
        %v224 = vld [vmem:[#allocation2] sm:$0x1]
        %v225 = vrot.slane %v223, 4
        %v226 = vadd.f32 %v223, %v225
        %v227 = vrot.slane %v226, 2
        %v228 = vadd.f32 %v226, %v227
        %v229 = vrot.slane %v228, 1
        %v230 = vadd.f32 %v228, %v229
        %v231 = vadd.f32 %v224, %v230
        %vm232 = vcmask 0
        %233 = vst.msk [vmem:[#allocation2] sm:$0x1] %vm232, %v231
        // Predicated region
        $region41: #{tpu_custom_call.1} parent=27 // pred_check
          %p234 = pneg %p212
        $region42: #{tpu_custom_call.1} parent=27 // pred_check_branch
          %236 = sbr.rel (%p234) target = $region44
        $region43: #{tpu_custom_call.1} parent=27 // pred_region
          %v237 = vld [vmem:[#allocation2] sm:$0x1]
          %238 = vst.msk [vmem:[%s211] sm:$0x1] %vm232, %v237
        $region44: #{tpu_custom_call.1} parent=27 // pred_fallthru
          _
        %p239 = scmp.lt.s32.totalorder %s23, 1
        %s240 = scalar_select %p239, %s23, 1
        %s241 = scalar_lea.vmem %s2, %s240
        // Predicated region
        $region45: #{tpu_custom_call.1} parent=27 // pred_check
          %p242 = pneg %p105
        $region46: #{tpu_custom_call.1} parent=27 // pred_check_branch
          %244 = sbr.rel (%p242) target = $region48
        $region47: #{tpu_custom_call.1} parent=27 // pred_region
          _
        $region48: #{tpu_custom_call.1} parent=27 // pred_fallthru
          _
      $region28: #{tpu_custom_call.1} parent=5 // pred_fallthru
        _
      %p245 = scmp.le.s32.totalorder 2, %s14
      // Predicated region
      $region49: #{tpu_custom_call.1} parent=5 // pred_check
        %p246 = pneg %p245
      $region50: #{tpu_custom_call.1} parent=5 // pred_check_branch
        %248 = sbr.rel (%p246) target = $region52
      $region51: #{tpu_custom_call.1} parent=5 // pred_region
        %s249 = ssub.s32 %s14, 2
        // Predicated region
        $region53: #{tpu_custom_call.1} parent=51 // pred_check
          %p250 = pneg %p111
        $region54: #{tpu_custom_call.1} parent=51 // pred_check_branch
          %252 = sbr.rel (%p250) target = $region56
        $region55: #{tpu_custom_call.1} parent=51 // pred_region
          %p253 = scmp.lt.s32.totalorder %s25, 1
          %s254 = scalar_select %p253, %s25, 1
          %s255 = scalar_lea.vmem %s2, %s254
        $region56: #{tpu_custom_call.1} parent=51 // pred_fallthru
          _
      $region52: #{tpu_custom_call.1} parent=5 // pred_fallthru
        _
    $region6: #{tpu_custom_call.1} parent=1 // loop_footer
      %s18 = sadd.s32 1, %s14
    $region7: #{tpu_custom_call.1} parent=1 // loop_footer_branch
      %13 = sbr.rel target = $region3
    $region8: #{tpu_custom_call.1} parent=1 // loop_exit
      _
    %256 = vsyncpa [#allocation4], 1
    %s257 = scalar_lea.sflag [#allocation4], 1
    %258 = vsyncpa %s257, 1
    %259 = vsyncpa [#allocation6], 1
    %s260 = scalar_lea.sflag [#allocation6], 1
    %261 = vsyncpa %s260, 1

</llo_original>
